<compile_context>
chip_gen: v7x
topology: tpu7x:2x2x1
jax: 0.10.0
libtpu: 0.0.40
codegen_flags: <defaults>
</compile_context>

<pallas_src>
import functools
import math

import jax
import jax.numpy as jnp
from jax.experimental import pallas as pl
from jax.experimental.pallas import tpu as pltpu

LANE = 128          # lane-dense padded width for the fc2 / output path
NEG_BIG = -1.0e30   # baked into padded logit columns (finite -> no inf-inf NaN)


def _round_up(x, m):
    return ((x + m - 1) // m) * m


def _choose_batch_tile(batch, tile_cap):
    """Pick (tile_rows, padded_batch).

    Goals:
      * tile_rows is a multiple of 16 (bf16 packs 16 rows per sublane group).
      * padded_batch % tile_rows == 0 with small (ideally zero) padding.
      * >= 2 grid steps whenever the batch allows it, so the "parallel" grid
        axis can shard across both v7x TensorCores.
    """
    b16 = _round_up(max(batch, 1), 16)
    cap = max(16, _round_up(min(tile_cap, b16), 16))

    # Preferred: a multiple-of-16 divisor of b16 -> no padding beyond the
    # 16-row alignment, exact grid.
    best_div = 0
    t = 16
    while t <= cap:
        if b16 % t == 0 and (b16 // t >= 2 or b16 == 16):
            best_div = t
        t += 16
    if best_div and (best_div >= 256 or best_div * 4 >= cap):
        return best_div, b16

    # Fallback (e.g. b16 = 16 * large prime): split into near-equal tiles and
    # accept a small (<= ~16 rows per tile) pad.
    n = -(-b16 // cap)
    if b16 >= 32:
        n = max(n, 2)
    tb = _round_up(-(-b16 // n), 16)
    return tb, n * tb


def mlp_logsoftmax_kernel(x_ref, w1_ref, b1_ref, w2_ref, b2_ref, o_ref):
    # x_ref : (TB, sh)   f32      w1_ref: (sh, C)    bf16    b1_ref: (1, C)    f32
    # w2_ref: (C, LANE)  bf16     b2_ref: (1, LANE)  f32     o_ref : (TB, LANE) f32
    #
    # In-kernel cast to bf16 (no separate HBM pass for the cast in the wrapper).
    x = x_ref[...].astype(jnp.bfloat16)

    # fc1: bf16 operands, f32 accumulation on the MXU; bias add in f32.
    h = jnp.dot(x, w1_ref[...], preferred_element_type=jnp.float32)
    h = h + b1_ref[...]

    # fc2 on the lane-padded (128-wide) weight slab. Padded columns have zero
    # weights and a -1e30 bias, so they vanish in the log-sum-exp below.
    y = jnp.dot(h.astype(jnp.bfloat16), w2_ref[...],
                preferred_element_type=jnp.float32)
    y = y + b2_ref[...]

    # Numerically stable log_softmax in f32 (pad columns: exp underflows to 0).
    m = jnp.max(y, axis=-1, keepdims=True)
    z = y - m
    lse = jnp.log(jnp.sum(jnp.exp(z), axis=-1, keepdims=True))
    o_ref[...] = (z - lse).astype(o_ref.dtype)


def prepare_mlp_params(w1, b1, w2, b2):
    """One-time parameter prep (transpose, lane-pad fc2, bf16 cast).

    Hoist this out of the per-call / jitted path for repeated inference."""
    c = w1.shape[0]                 # hidden width (512)
    d = w2.shape[0]                 # num classes (10)
    w1_t = w1.T.astype(jnp.bfloat16)                                   # (sh, c)
    b1_2d = b1.reshape(1, c).astype(jnp.float32)                       # (1, c)
    w2_t = jnp.zeros((c, LANE), jnp.bfloat16).at[:, :d].set(
        w2.T.astype(jnp.bfloat16))                                     # (c, 128)
    # Large negative bias in the padded logit columns replaces any in-kernel
    # iota/where masking (finite value -> no -inf arithmetic edge cases).
    b2_2d = jnp.full((1, LANE), NEG_BIG, jnp.float32).at[:, :d].set(
        b2.astype(jnp.float32))                                        # (1, 128)
    return w1_t, b1_2d, w2_t, b2_2d


def net_mlp_apply(x, w1_t, b1_2d, w2_t, b2_2d, *, num_classes=10, tile_b=1024):
    """Run the fused fc1 -> fc2 -> log_softmax kernel on pre-prepped params."""
    B = x.shape[0]
    sh = math.prod(x.shape[1:])     # static shape product -> jit safe
    c = w1_t.shape[1]               # hidden width

    x2d = x.reshape(B, sh)          # == x.view(B, -1); stays f32, no copy

    tb, b_pad = _choose_batch_tile(B, tile_b)
    if b_pad != B:
        # TODO(synk): a masked last tile would avoid this extra HBM pass; the
        # tile chooser keeps the pad small (zero for nicely sized batches).
        x2d = jnp.pad(x2d, ((0, b_pad - B), (0, 0)))

    # Explicit scoped-VMEM budget: x/out tiles are double-buffered, weights are
    # grid-invariant. Scoped defaults differ per generation (v5e 16 MiB,
    # v6e/v7x 32 MiB), so size it from the actual working set.
    param_bytes = (w1_t.size * 2 + b1_2d.size * 4 + w2_t.size * 2
                   + b2_2d.size * 4)
    vmem_need = (2 * tb * sh * 4          # x tiles, double buffered, f32
                 + 2 * tb * LANE * 4      # out tiles, double buffered, f32
                 + 2 * param_bytes        # weights/biases (conservative 2x)
                 + (2 << 20))             # compiler scratch headroom
    vmem_limit = int(min(max(vmem_need, 4 << 20), 64 << 20))

    out_padded = pl.pallas_call(
        mlp_logsoftmax_kernel,
        out_shape=jax.ShapeDtypeStruct((b_pad, LANE), jnp.float32),
        grid=(b_pad // tb,),
        in_specs=[
            pl.BlockSpec((tb, sh), lambda i: (i, 0)),   # x: tiled over batch
            # Weights/biases: constant index maps -> fetched once, stay VMEM
            # resident across grid steps. (If VMEM ever gets tight, add
            # pipeline_mode=pl.Buffered(1) to these four specs.)
            pl.BlockSpec((sh, c), lambda i: (0, 0)),
            pl.BlockSpec((1, c), lambda i: (0, 0)),
            pl.BlockSpec((c, LANE), lambda i: (0, 0)),
            pl.BlockSpec((1, LANE), lambda i: (0, 0)),
        ],
        out_specs=pl.BlockSpec((tb, LANE), lambda i: (i, 0)),
        compiler_params=pltpu.CompilerParams(
            dimension_semantics=("parallel",),          # shards across TCs (v7x)
            vmem_limit_bytes=vmem_limit),
    )(x2d, w1_t, b1_2d, w2_t, b2_2d)

    return out_padded[:B, :num_classes]


def net_mlp_forward(x, w1, b1, w2, b2, *, tile_b=1024):
    """Convenience one-shot: same semantics as NetMLP.forward.

    x: (B, ...) f32; w1: (512, sh); b1: (512,); w2: (10, 512); b2: (10,).
    Returns (B, 10) log-probabilities."""
    w1_t, b1_2d, w2_t, b2_2d = prepare_mlp_params(w1, b1, w2, b2)
    return net_mlp_apply(x, w1_t, b1_2d, w2_t, b2_2d,
                         num_classes=w2.shape[0], tile_b=tile_b)


if __name__ == "__main__":
    key = jax.random.PRNGKey(0)
    k_x, k_w1, k_b1, k_w2, k_b2 = jax.random.split(key, 5)

    # Small MNIST-like input: batch=32, 1x16x16 images -> sh = 256.
    # batch=32 yields a 2-step grid, exercising the tiled / dual-TC path.
    B, C, H, W = 32, 1, 16, 16
    sh = C * H * W
    c, d = 512, 10

    x = jax.random.normal(k_x, (B, C, H, W), dtype=jnp.float32)

    # Deterministic Kaiming-uniform-ish init (same shapes as torch.nn.Linear).
    bound1 = 1.0 / math.sqrt(sh)
    w1 = jax.random.uniform(k_w1, (c, sh), jnp.float32, -bound1, bound1)
    b1 = jax.random.uniform(k_b1, (c,), jnp.float32, -bound1, bound1)
    bound2 = 1.0 / math.sqrt(c)
    w2 = jax.random.uniform(k_w2, (d, c), jnp.float32, -bound2, bound2)
    b2 = jax.random.uniform(k_b2, (d,), jnp.float32, -bound2, bound2)

    # One-time weight prep, hoisted out of the jitted per-call path.
    params = prepare_mlp_params(w1, b1, w2, b2)
    fwd = jax.jit(functools.partial(net_mlp_apply, num_classes=d))
    out = jax.block_until_ready(fwd(x, *params))

    # Plain-JAX f32 reference (bf16 MXU operands -> small diffs).
    xr = x.reshape(B, -1)
    ref = jax.nn.log_softmax((xr @ w1.T + b1) @ w2.T + b2, axis=1)

    assert out.shape == (B, d), out.shape
    max_err = float(jnp.max(jnp.abs(out - ref)))
    assert jnp.allclose(out, ref, atol=2.5e-2, rtol=2.5e-2), max_err

    print("KERNEL_OK")
</pallas_src>

<mosaic_0001>
module attributes {stable_mosaic.version = 11 : i64} {
  func.func @mlp_logsoftmax_kernel(%arg0: i32, %arg1: memref<16x256xf32, #tpu.memory_space<vmem>>, %arg2: memref<256x512xbf16, #tpu.memory_space<vmem>>, %arg3: memref<1x512xf32, #tpu.memory_space<vmem>>, %arg4: memref<512x128xbf16, #tpu.memory_space<vmem>>, %arg5: memref<1x128xf32, #tpu.memory_space<vmem>>, %arg6: memref<16x128xf32, #tpu.memory_space<vmem>>) attributes {dimension_semantics = [#tpu.dimension_semantics<parallel>], iteration_bounds = array<i64: 2>, scalar_prefetch = 0 : i64, scratch_operands = 0 : i64, tpu.core_type = #tpu.core_type<tc>, window_params = [{transform_indices = @transform_0, window_bounds = array<i64: 16, 256>}, {pipeline_mode = #tpu.pipeline_mode<synchronous>, transform_indices = @transform_1, window_bounds = array<i64: 256, 512>}, {pipeline_mode = #tpu.pipeline_mode<synchronous>, transform_indices = @transform_2, window_bounds = array<i64: 1, 512>}, {pipeline_mode = #tpu.pipeline_mode<synchronous>, transform_indices = @transform_3, window_bounds = array<i64: 512, 128>}, {pipeline_mode = #tpu.pipeline_mode<synchronous>, transform_indices = @transform_4, window_bounds = array<i64: 1, 128>}, {transform_indices = @transform_5, window_bounds = array<i64: 16, 128>}]} {
    %c0 = arith.constant 0 : index
    %c0_0 = arith.constant 0 : index
    %0 = vector.load %arg1[%c0, %c0_0] : memref<16x256xf32, #tpu.memory_space<vmem>>, vector<16x256xf32>
    %1 = arith.truncf %0 : vector<16x256xf32> to vector<16x256xbf16>
    %c0_1 = arith.constant 0 : index
    %c0_2 = arith.constant 0 : index
    %2 = vector.load %arg2[%c0_1, %c0_2] : memref<256x512xbf16, #tpu.memory_space<vmem>>, vector<256x512xbf16>
    %cst = arith.constant dense<0.000000e+00> : vector<16x512xf32>
    %3 = tpu.matmul %1, %2, %cst {dimension_numbers = #tpu.dot_dimension_numbers<[1], [0], [0], [1], [0, 0, 1, 1], [], []>} : vector<16x256xbf16>, vector<256x512xbf16>, vector<16x512xf32> -> vector<16x512xf32>
    %c0_3 = arith.constant 0 : index
    %c0_4 = arith.constant 0 : index
    %4 = vector.load %arg3[%c0_3, %c0_4] : memref<1x512xf32, #tpu.memory_space<vmem>>, vector<1x512xf32>
    %5 = vector.broadcast %4 : vector<1x512xf32> to vector<16x512xf32>
    %6 = arith.addf %3, %5 : vector<16x512xf32>
    %7 = arith.truncf %6 : vector<16x512xf32> to vector<16x512xbf16>
    %c0_5 = arith.constant 0 : index
    %c0_6 = arith.constant 0 : index
    %8 = vector.load %arg4[%c0_5, %c0_6] : memref<512x128xbf16, #tpu.memory_space<vmem>>, vector<512x128xbf16>
    %cst_7 = arith.constant dense<0.000000e+00> : vector<16x128xf32>
    %9 = tpu.matmul %7, %8, %cst_7 {dimension_numbers = #tpu.dot_dimension_numbers<[1], [0], [0], [1], [0, 0, 1, 1], [], []>} : vector<16x512xbf16>, vector<512x128xbf16>, vector<16x128xf32> -> vector<16x128xf32>
    %c0_8 = arith.constant 0 : index
    %c0_9 = arith.constant 0 : index
    %10 = vector.load %arg5[%c0_8, %c0_9] : memref<1x128xf32, #tpu.memory_space<vmem>>, vector<1x128xf32>
    %11 = vector.broadcast %10 : vector<1x128xf32> to vector<16x128xf32>
    %12 = arith.addf %9, %11 : vector<16x128xf32>
    %cst_10 = arith.constant dense<0xFF800000> : vector<16xf32>
    %13 = vector.multi_reduction <maximumf>, %12, %cst_10 [1] : vector<16x128xf32> to vector<16xf32>
    %14 = vector.shape_cast %13 : vector<16xf32> to vector<16x1xf32>
    %15 = vector.broadcast %14 : vector<16x1xf32> to vector<16x128xf32>
    %16 = arith.subf %12, %15 : vector<16x128xf32>
    %17 = math.exp %16 : vector<16x128xf32>
    %cst_11 = arith.constant dense<0.000000e+00> : vector<16xf32>
    %18 = vector.multi_reduction <add>, %17, %cst_11 [1] : vector<16x128xf32> to vector<16xf32>
    %19 = vector.shape_cast %18 : vector<16xf32> to vector<16x1xf32>
    %20 = math.log %19 : vector<16x1xf32>
    %21 = vector.broadcast %20 : vector<16x1xf32> to vector<16x128xf32>
    %22 = arith.subf %16, %21 : vector<16x128xf32>
    %c0_12 = arith.constant 0 : index
    %c0_13 = arith.constant 0 : index
    %23 = vector.load %arg6[%c0_12, %c0_13] : memref<16x128xf32, #tpu.memory_space<vmem>>, vector<16x128xf32>
    tpu.vector_store %arg6[%c0_12, %c0_13], %22 {strides = array<i32>} : memref<16x128xf32, #tpu.memory_space<vmem>>, vector<16x128xf32>,
    return
  }
  func.func @transform_0(%arg0: i32) -> (i32, i32) {
    %c0_i32 = arith.constant 0 : i32
    %c0_i32_0 = arith.constant 0 : i32
    return %arg0, %c0_i32 : i32, i32
  }
  func.func @transform_1(%arg0: i32) -> (i32, i32) {
    %c0_i32 = arith.constant 0 : i32
    %c0_i32_0 = arith.constant 0 : i32
    %c0_i32_1 = arith.constant 0 : i32
    return %c0_i32, %c0_i32_0 : i32, i32
  }
  func.func @transform_2(%arg0: i32) -> (i32, i32) {
    %c0_i32 = arith.constant 0 : i32
    %c0_i32_0 = arith.constant 0 : i32
    %c0_i32_1 = arith.constant 0 : i32
    return %c0_i32, %c0_i32_0 : i32, i32
  }
  func.func @transform_3(%arg0: i32) -> (i32, i32) {
    %c0_i32 = arith.constant 0 : i32
    %c0_i32_0 = arith.constant 0 : i32
    %c0_i32_1 = arith.constant 0 : i32
    return %c0_i32, %c0_i32_0 : i32, i32
  }
  func.func @transform_4(%arg0: i32) -> (i32, i32) {
    %c0_i32 = arith.constant 0 : i32
    %c0_i32_0 = arith.constant 0 : i32
    %c0_i32_1 = arith.constant 0 : i32
    return %c0_i32, %c0_i32_0 : i32, i32
  }
  func.func @transform_5(%arg0: i32) -> (i32, i32) {
    %c0_i32 = arith.constant 0 : i32
    %c0_i32_0 = arith.constant 0 : i32
    return %arg0, %c0_i32 : i32, i32
  }
}

</mosaic_0001>

<llo_original>
// kernel: net_mlp_apply.1
$region0: #{net_mlp_apply.1}
  #allocation0 [shape = 'u32[]', space=smem, size = 0x4, offset = 0x4, fixed_abs, tag = 'smem constant byte address 0x4 - core index']
  #allocation1 [shape = 'u32[144,128]{1,0:T(1,128)}', space=vmem, size = 0x12000, scoped, tag = 'internal scratch']
  %s0 = inlined_call_operand.vmem [shape: f32[32,256], index: 0, kind: input, shape index: {}]
  %s1 = inlined_call_operand.hbm [shape: bf16[256,512], index: 1, kind: input, shape index: {}]
  %s2 = inlined_call_operand.vmem [shape: f32[1,512], index: 2, kind: input, shape index: {}]
  %s3 = inlined_call_operand.vmem [shape: bf16[512,128], index: 3, kind: input, shape index: {}]
  %s4 = inlined_call_operand.vmem [shape: f32[1,128], index: 4, kind: input, shape index: {}]
  %s5 = inlined_call_operand.vmem [shape: f32[32,128], index: 5, kind: output, shape index: {}]
  %s6 = sld [smem:[#allocation0]]
  $region57: #{net_mlp_apply.1} parent=0
    _
  %s8 = ssub.s32 1, %s6
  %s9 = scalar_select 0, %s8, %s6
  $region1: #{net_mlp_apply.1} parent=0
    #allocation2 [shape = 'u8[262144]{0}', space=vmem, size = 0x40000, scoped, tag = 'input window, operand 1, single buffered']
    #allocation3 [shape = 's32[2]{0}', space=sflag, size = 0x8, scoped, tag = 'scoped memory for net_mlp_apply.1']
    %10 = vsyncpa [#allocation3], 0
    loop: start=0, step=1, limit=4
    $region2: #{net_mlp_apply.1} parent=1 // loop_pre_header
      _
    $region3: #{net_mlp_apply.1} parent=1 // loop_header
      %s12 = sphi 0, %s16
      %p13 = scmp.ge.s32.totalorder %s12, 4
      %s22 = sphi 0, %s24
      %s25 = sphi 0, %s22
      %s26 = sphi 0, %s25
      %s42 = sphi 0, %s26
      %s46 = sphi 0, %s46
      %s48 = sphi 0, %s46
      %s49 = sphi 0, %s48
      %s63 = sphi 0, %s49
      %s67 = sphi 0, %s67
      %s69 = sphi 0, %s67
      %s70 = sphi 0, %s69
      %s84 = sphi 0, %s70
      %s88 = sphi 0, %s88
      %s90 = sphi 0, %s88
      %s91 = sphi 0, %s90
      %s105 = sphi 0, %s91
      %s109 = sphi 0, %s109
      %s111 = sphi 0, %s109
      %s112 = sphi 0, %s111
      %s126 = sphi 0, %s112
      %s132 = sphi 0, %s134
      %s135 = sphi 0, %s132
      %s136 = sphi 0, %s135
      %s152 = sphi 0, %s136
    $region4: #{net_mlp_apply.1} parent=1 // loop_header_branch
      %15 = sbr.rel (%p13) target = $region8
    $region5: #{net_mlp_apply.1} parent=1 // loop_body
      %s17 = ssub.s32 %s12, 1
      %s18 = ssub.s32 %s12, 2
      %s19 = sadd.s32 %s12, 1
      %s20 = ssub.s32 %s12, %s19
      %p21 = scmp.eq.s32.totalorder %s20, 0
      %s23 = sadd.s32 %s22, 1
      %s24 = scalar_select %p21, %s22, %s23
      %p27 = pneg %p21
      %p28 = scmp.eq.s32.totalorder %s12, 1
      %p29 = por %p27, %p28
      %p30 = scmp.ne.s32.totalorder %s22, %s25
      %p31 = scmp.eq.s32.totalorder %s12, 0
      %p32 = por %p30, %p31
      %p33 = scmp.ne.s32.totalorder %s22, %s25
      %p34 = scmp.eq.s32.totalorder %s17, 1
      %p35 = por %p33, %p34
      %p36 = scmp.ne.s32.totalorder %s25, %s26
      %p37 = scmp.eq.s32.totalorder %s17, 0
      %p38 = por %p36, %p37
      %p39 = scmp.ne.s32.totalorder %s25, %s26
      %p40 = scmp.eq.s32.totalorder %s18, 1
      %p41 = por %p39, %p40
      %p43 = scmp.ne.s32.totalorder %s26, %s42
      %p44 = scmp.eq.s32.totalorder %s18, 0
      %p45 = por %p43, %p44
      %s47 = sadd.s32 %s46, 1
      %p50 = scmp.eq.s32.totalorder %s12, 1
      %p51 = scmp.ne.s32.totalorder %s46, %s48
      %p52 = scmp.eq.s32.totalorder %s12, 0
      %p53 = por %p51, %p52
      %p54 = scmp.ne.s32.totalorder %s46, %s48
      %p55 = scmp.eq.s32.totalorder %s17, 1
      %p56 = por %p54, %p55
      %p57 = scmp.ne.s32.totalorder %s48, %s49
      %p58 = scmp.eq.s32.totalorder %s17, 0
      %p59 = por %p57, %p58
      %p60 = scmp.ne.s32.totalorder %s48, %s49
      %p61 = scmp.eq.s32.totalorder %s18, 1
      %p62 = por %p60, %p61
      %p64 = scmp.ne.s32.totalorder %s49, %s63
      %p65 = scmp.eq.s32.totalorder %s18, 0
      %p66 = por %p64, %p65
      %s68 = sadd.s32 %s67, 1
      %p71 = scmp.eq.s32.totalorder %s12, 1
      %p72 = scmp.ne.s32.totalorder %s67, %s69
      %p73 = scmp.eq.s32.totalorder %s12, 0
      %p74 = por %p72, %p73
      %p75 = scmp.ne.s32.totalorder %s67, %s69
      %p76 = scmp.eq.s32.totalorder %s17, 1
      %p77 = por %p75, %p76
      %p78 = scmp.ne.s32.totalorder %s69, %s70
      %p79 = scmp.eq.s32.totalorder %s17, 0
      %p80 = por %p78, %p79
      %p81 = scmp.ne.s32.totalorder %s69, %s70
      %p82 = scmp.eq.s32.totalorder %s18, 1
      %p83 = por %p81, %p82
      %p85 = scmp.ne.s32.totalorder %s70, %s84
      %p86 = scmp.eq.s32.totalorder %s18, 0
      %p87 = por %p85, %p86
      %s89 = sadd.s32 %s88, 1
      %p92 = scmp.eq.s32.totalorder %s12, 1
      %p93 = scmp.ne.s32.totalorder %s88, %s90
      %p94 = scmp.eq.s32.totalorder %s12, 0
      %p95 = por %p93, %p94
      %p96 = scmp.ne.s32.totalorder %s88, %s90
      %p97 = scmp.eq.s32.totalorder %s17, 1
      %p98 = por %p96, %p97
      %p99 = scmp.ne.s32.totalorder %s90, %s91
      %p100 = scmp.eq.s32.totalorder %s17, 0
      %p101 = por %p99, %p100
      %p102 = scmp.ne.s32.totalorder %s90, %s91
      %p103 = scmp.eq.s32.totalorder %s18, 1
      %p104 = por %p102, %p103
      %p106 = scmp.ne.s32.totalorder %s91, %s105
      %p107 = scmp.eq.s32.totalorder %s18, 0
      %p108 = por %p106, %p107
      %s110 = sadd.s32 %s109, 1
      %p113 = scmp.eq.s32.totalorder %s12, 1
      %p114 = scmp.ne.s32.totalorder %s109, %s111
      %p115 = scmp.eq.s32.totalorder %s12, 0
      %p116 = por %p114, %p115
      %p117 = scmp.ne.s32.totalorder %s109, %s111
      %p118 = scmp.eq.s32.totalorder %s17, 1
      %p119 = por %p117, %p118
      %p120 = scmp.ne.s32.totalorder %s111, %s112
      %p121 = scmp.eq.s32.totalorder %s17, 0
      %p122 = por %p120, %p121
      %p123 = scmp.ne.s32.totalorder %s111, %s112
      %p124 = scmp.eq.s32.totalorder %s18, 1
      %p125 = por %p123, %p124
      %p127 = scmp.ne.s32.totalorder %s112, %s126
      %p128 = scmp.eq.s32.totalorder %s18, 0
      %p129 = por %p127, %p128
      %s130 = ssub.s32 %s12, %s19
      %p131 = scmp.eq.s32.totalorder %s130, 0
      %s133 = sadd.s32 %s132, 1
      %s134 = scalar_select %p131, %s132, %s133
      %p137 = pneg %p131
      %p138 = scmp.eq.s32.totalorder %s12, 1
      %p139 = por %p137, %p138
      %p140 = scmp.ne.s32.totalorder %s132, %s135
      %p141 = scmp.eq.s32.totalorder %s12, 0
      %p142 = por %p140, %p141
      %p143 = scmp.ne.s32.totalorder %s132, %s135
      %p144 = scmp.eq.s32.totalorder %s17, 1
      %p145 = por %p143, %p144
      %p146 = scmp.ne.s32.totalorder %s135, %s136
      %p147 = scmp.eq.s32.totalorder %s17, 0
      %p148 = por %p146, %p147
      %p149 = scmp.ne.s32.totalorder %s135, %s136
      %p150 = scmp.eq.s32.totalorder %s18, 1
      %p151 = por %p149, %p150
      %p153 = scmp.ne.s32.totalorder %s136, %s152
      %p154 = scmp.eq.s32.totalorder %s18, 0
      %p155 = por %p153, %p154
      %p156 = scmp.le.s32.totalorder 1, %s12
      %p157 = scmp.lt.s32.totalorder %s12, 3
      %p158 = pnand %p156, %p157
      %p159 = pneg %p158
      // Predicated region
      $region9: #{net_mlp_apply.1} parent=5 // pred_check
        _
      $region10: #{net_mlp_apply.1} parent=5 // pred_check_branch
        %161 = sbr.rel (%p158) target = $region12
      $region11: #{net_mlp_apply.1} parent=5 // pred_region
        %s162 = ssub.s32 %s12, 1
        // Predicated region
        $region13: #{net_mlp_apply.1} parent=11 // pred_check
          %p163 = pneg %p59
        $region14: #{net_mlp_apply.1} parent=11 // pred_check_branch
          %165 = sbr.rel (%p163) target = $region16
        $region15: #{net_mlp_apply.1} parent=11 // pred_region
          %s167 = ssub.s32 8192, 8192
          %168 = vsyncadd [#allocation3], %s167
          %s169 = sshll.u32 [#allocation2], 4
          %s170 = int_to_ptr.vmem [resolvable:$true] %s169
          %175 = dma.hbm_to_vmem [thread:$0]  %s1, 8192, %s170, [#allocation3], 256, 256, 16
        $region16: #{net_mlp_apply.1} parent=11 // pred_fallthru
          _
        // Predicated region
        $region17: #{net_mlp_apply.1} parent=11 // pred_check
          %p176 = pneg %p80
        $region18: #{net_mlp_apply.1} parent=11 // pred_check_branch
          %178 = sbr.rel (%p176) target = $region20
        $region19: #{net_mlp_apply.1} parent=11 // pred_region
          _
        $region20: #{net_mlp_apply.1} parent=11 // pred_fallthru
          _
        // Predicated region
        $region21: #{net_mlp_apply.1} parent=11 // pred_check
          %p179 = pneg %p101
        $region22: #{net_mlp_apply.1} parent=11 // pred_check_branch
          %181 = sbr.rel (%p179) target = $region24
        $region23: #{net_mlp_apply.1} parent=11 // pred_region
          _
        $region24: #{net_mlp_apply.1} parent=11 // pred_fallthru
          _
        // Predicated region
        $region25: #{net_mlp_apply.1} parent=11 // pred_check
          %p182 = pneg %p122
        $region26: #{net_mlp_apply.1} parent=11 // pred_check_branch
          %184 = sbr.rel (%p182) target = $region28
        $region27: #{net_mlp_apply.1} parent=11 // pred_region
          _
        $region28: #{net_mlp_apply.1} parent=11 // pred_fallthru
          _
      $region12: #{net_mlp_apply.1} parent=5 // pred_fallthru
        _
      %p185 = scmp.lt.s32.totalorder %s12, 2
      // Predicated region
      $region29: #{net_mlp_apply.1} parent=5 // pred_check
        %p186 = pneg %p185
      $region30: #{net_mlp_apply.1} parent=5 // pred_check_branch
        %188 = sbr.rel (%p186) target = $region32
      $region31: #{net_mlp_apply.1} parent=5 // pred_region
        // Predicated region
        $region33: #{net_mlp_apply.1} parent=31 // pred_check
          %p189 = pneg %p32
        $region34: #{net_mlp_apply.1} parent=31 // pred_check_branch
          %191 = sbr.rel (%p189) target = $region36
        $region35: #{net_mlp_apply.1} parent=31 // pred_region
          %s192 = smul.u32 2, %s12
          %p193 = scmp.lt.s32.totalorder %s192, 3
          %s194 = scalar_select %p193, %s192, 3
          %s195 = smul.addr %s194, 2
          %s196 = smul.addr %s195, 8
          %s197 = scalar_lea.vmem %s0, %s196
          %s198 = smul.u32 2, %s12
        $region36: #{net_mlp_apply.1} parent=31 // pred_fallthru
          _
      $region32: #{net_mlp_apply.1} parent=5 // pred_fallthru
        _
      %p199 = scmp.le.s32.totalorder 1, %s12
      %p200 = scmp.lt.s32.totalorder %s12, 3
      %p201 = pnand %p199, %p200
      %p202 = pneg %p201
      // Predicated region
      $region37: #{net_mlp_apply.1} parent=5 // pred_check
        _
      $region38: #{net_mlp_apply.1} parent=5 // pred_check_branch
        %204 = sbr.rel (%p201) target = $region40
      $region39: #{net_mlp_apply.1} parent=5 // pred_region
        %s205 = ssub.s32 %s12, 1
        // Predicated region
        $region41: #{net_mlp_apply.1} parent=39 // pred_check
          %p206 = pneg %p59
        $region42: #{net_mlp_apply.1} parent=39 // pred_check_branch
          %208 = sbr.rel (%p206) target = $region44
        $region43: #{net_mlp_apply.1} parent=39 // pred_region
          %209 = dma.done [#allocation3], 8192
        $region44: #{net_mlp_apply.1} parent=39 // pred_fallthru
          _
        %s210 = smul.u32 2, %s17
        %p211 = scmp.lt.s32.totalorder %s210, 3
        %s212 = scalar_select %p211, %s210, 3
        %s213 = smul.addr %s212, 2
        %s214 = smul.addr %s213, 8
        %s215 = scalar_lea.vmem %s0, %s214
        %p216 = pneg %p38
        %p217 = pneg %p35
        %p218 = pneg %p59
        %p219 = pneg %p56
        %p220 = pneg %p80
        %p221 = pneg %p77
        %p222 = pneg %p101
        %p223 = pneg %p98
        %p224 = pneg %p122
        %p225 = pneg %p119
        %p226 = pneg %p148
        %p227 = pneg %p145
        %s228 = smul.u32 2, %s17
        %p229 = scmp.lt.s32.totalorder %s228, 3
        %s230 = scalar_select %p229, %s228, 3
        %s231 = smul.addr %s230, 8
        %s232 = scalar_lea.vmem %s5, %s231
        %s233 = smul.u32 2, %s17
        %p234 = scmp.lt.s32.totalorder %s233, 3
        %s235 = scalar_select %p234, %s233, 3
        %s236 = smul.addr %s235, 2
        %s237 = smul.addr %s236, 8
        %s238 = scalar_lea.vmem %s0, %s237
        %s239 = smul.u32 2, %s17
        %s240 = smul.u32 2, %s17
        %p241 = scmp.lt.s32.totalorder %s240, 3
        %s242 = scalar_select %p241, %s240, 3
        %s243 = smul.addr %s242, 8
        %s244 = scalar_lea.vmem %s5, %s243
        %s245 = smul.u32 2, %s17
        %v247 = vld [vmem:[%s238] sm:$0xff]
        %v248 = vld [vmem:[%s238 + $0x8] sm:$0xff]
        %v249 = vld [vmem:[%s238 + $0x10] sm:$0xff]
        %v250 = vld [vmem:[%s238 + $0x18] sm:$0xff]
        %v251 = vpack.c.bf16 %v249, %v247
        %v252 = vpack.c.bf16 %v250, %v248
        %v253 = vld [vmem:[#allocation2] sm:$0xff]
        %v254 = vld [vmem:[#allocation2 + $0x8] sm:$0xff]
        %v255 = vld [vmem:[#allocation2 + $0x10] sm:$0xff]
        %v256 = vld [vmem:[#allocation2 + $0x18] sm:$0xff]
        %v257 = vld [vmem:[#allocation2 + $0x20] sm:$0xff]
        %v258 = vld [vmem:[#allocation2 + $0x28] sm:$0xff]
        %v259 = vld [vmem:[#allocation2 + $0x30] sm:$0xff]
        %v260 = vld [vmem:[#allocation2 + $0x38] sm:$0xff]
        %v261 = vld [vmem:[#allocation2 + $0x40] sm:$0xff]
        %v262 = vld [vmem:[#allocation2 + $0x48] sm:$0xff]
        %v263 = vld [vmem:[#allocation2 + $0x50] sm:$0xff]
        %v264 = vld [vmem:[#allocation2 + $0x58] sm:$0xff]
        %v265 = vld [vmem:[#allocation2 + $0x60] sm:$0xff]
        %v266 = vld [vmem:[#allocation2 + $0x68] sm:$0xff]
        %v267 = vld [vmem:[#allocation2 + $0x70] sm:$0xff]
        %v268 = vld [vmem:[#allocation2 + $0x78] sm:$0xff]
        %v269 = vld [vmem:[#allocation2 + $0x80] sm:$0xff]
        %v270 = vld [vmem:[#allocation2 + $0x88] sm:$0xff]
        %v271 = vld [vmem:[#allocation2 + $0x90] sm:$0xff]
        %v272 = vld [vmem:[#allocation2 + $0x98] sm:$0xff]
        %v273 = vld [vmem:[#allocation2 + $0xa0] sm:$0xff]
        %v274 = vld [vmem:[#allocation2 + $0xa8] sm:$0xff]
        %v275 = vld [vmem:[#allocation2 + $0xb0] sm:$0xff]
        %v276 = vld [vmem:[#allocation2 + $0xb8] sm:$0xff]
        %v277 = vld [vmem:[#allocation2 + $0xc0] sm:$0xff]
        %v278 = vld [vmem:[#allocation2 + $0xc8] sm:$0xff]
        %v279 = vld [vmem:[#allocation2 + $0xd0] sm:$0xff]
        %v280 = vld [vmem:[#allocation2 + $0xd8] sm:$0xff]
        %v281 = vld [vmem:[#allocation2 + $0xe0] sm:$0xff]
        %v282 = vld [vmem:[#allocation2 + $0xe8] sm:$0xff]
        %v283 = vld [vmem:[#allocation2 + $0xf0] sm:$0xff]
        %v284 = vld [vmem:[#allocation2 + $0xf8] sm:$0xff]
        %v285 = vld [vmem:[#allocation2 + $0x100] sm:$0xff]
        %v286 = vld [vmem:[#allocation2 + $0x108] sm:$0xff]
        %v287 = vld [vmem:[#allocation2 + $0x110] sm:$0xff]
        %v288 = vld [vmem:[#allocation2 + $0x118] sm:$0xff]
        %v289 = vld [vmem:[#allocation2 + $0x120] sm:$0xff]
        %v290 = vld [vmem:[#allocation2 + $0x128] sm:$0xff]
        %v291 = vld [vmem:[#allocation2 + $0x130] sm:$0xff]
        %v292 = vld [vmem:[#allocation2 + $0x138] sm:$0xff]
        %v293 = vld [vmem:[#allocation2 + $0x140] sm:$0xff]
        %v294 = vld [vmem:[#allocation2 + $0x148] sm:$0xff]
        %v295 = vld [vmem:[#allocation2 + $0x150] sm:$0xff]
        %v296 = vld [vmem:[#allocation2 + $0x158] sm:$0xff]
        %v297 = vld [vmem:[#allocation2 + $0x160] sm:$0xff]
        %v298 = vld [vmem:[#allocation2 + $0x168] sm:$0xff]
        %v299 = vld [vmem:[#allocation2 + $0x170] sm:$0xff]
        %v300 = vld [vmem:[#allocation2 + $0x178] sm:$0xff]
        %v301 = vld [vmem:[#allocation2 + $0x180] sm:$0xff]
        %v302 = vld [vmem:[#allocation2 + $0x188] sm:$0xff]
        %v303 = vld [vmem:[#allocation2 + $0x190] sm:$0xff]
        %v304 = vld [vmem:[#allocation2 + $0x198] sm:$0xff]
        %v305 = vld [vmem:[#allocation2 + $0x1a0] sm:$0xff]
        %v306 = vld [vmem:[#allocation2 + $0x1a8] sm:$0xff]
        %v307 = vld [vmem:[#allocation2 + $0x1b0] sm:$0xff]
        %v308 = vld [vmem:[#allocation2 + $0x1b8] sm:$0xff]
        %v309 = vld [vmem:[#allocation2 + $0x1c0] sm:$0xff]
        %v310 = vld [vmem:[#allocation2 + $0x1c8] sm:$0xff]
        %v311 = vld [vmem:[#allocation2 + $0x1d0] sm:$0xff]
        %v312 = vld [vmem:[#allocation2 + $0x1d8] sm:$0xff]
        %v313 = vld [vmem:[#allocation2 + $0x1e0] sm:$0xff]
        %v314 = vld [vmem:[#allocation2 + $0x1e8] sm:$0xff]
        %v315 = vld [vmem:[#allocation2 + $0x1f0] sm:$0xff]
        %v316 = vld [vmem:[#allocation2 + $0x1f8] sm:$0xff]
        %v317 = vld [vmem:[%s2] sm:$0xf]
        %v319 = vlaneseq
        %v320 = vshrl.u32 %v319, 7
        %v321 = vsub.s32 0, %v320
        %v322 = vrot.slane %v317, %v321
        %v323 = vlaneseq
        %v324 = vshrl.u32 %v323, 7
        %v325 = vsub.s32 1, %v324
        %v326 = vrot.slane %v317, %v325
        %v327 = vlaneseq
        %v328 = vshrl.u32 %v327, 7
        %v329 = vsub.s32 2, %v328
        %v330 = vrot.slane %v317, %v329
        %v331 = vlaneseq
        %v332 = vshrl.u32 %v331, 7
        %v333 = vsub.s32 3, %v332
        %v334 = vrot.slane %v317, %v333
        %v403 = vunpack.c.l.b16 %v253
        %v404 = vunpack.c.h.b16 %v253
        %v405 = vunpack.c.l.b16 %v254
        %v406 = vunpack.c.h.b16 %v254
        %v407 = vunpack.c.l.b16 %v255
        %v408 = vunpack.c.h.b16 %v255
        %v409 = vunpack.c.l.b16 %v256
        %v410 = vunpack.c.h.b16 %v256
        %v411 = vunpack.c.l.b16 %v257
        %v412 = vunpack.c.h.b16 %v257
        %v413 = vunpack.c.l.b16 %v258
        %v414 = vunpack.c.h.b16 %v258
        %v415 = vunpack.c.l.b16 %v259
        %v416 = vunpack.c.h.b16 %v259
        %v417 = vunpack.c.l.b16 %v260
        %v418 = vunpack.c.h.b16 %v260
        %v419 = vunpack.c.l.b16 %v261
        %v420 = vunpack.c.h.b16 %v261
        %v421 = vunpack.c.l.b16 %v262
        %v422 = vunpack.c.h.b16 %v262
        %v423 = vunpack.c.l.b16 %v263
        %v424 = vunpack.c.h.b16 %v263
        %v425 = vunpack.c.l.b16 %v264
        %v426 = vunpack.c.h.b16 %v264
        %v427 = vunpack.c.l.b16 %v265
        %v428 = vunpack.c.h.b16 %v265
        %v429 = vunpack.c.l.b16 %v266
        %v430 = vunpack.c.h.b16 %v266
        %v431 = vunpack.c.l.b16 %v267
        %v432 = vunpack.c.h.b16 %v267
        %v433 = vunpack.c.l.b16 %v268
        %v434 = vunpack.c.h.b16 %v268
        %v435 = vunpack.c.l.b16 %v269
        %v436 = vunpack.c.h.b16 %v269
        %v437 = vunpack.c.l.b16 %v270
        %v438 = vunpack.c.h.b16 %v270
        %v439 = vunpack.c.l.b16 %v271
        %v440 = vunpack.c.h.b16 %v271
        %v441 = vunpack.c.l.b16 %v272
        %v442 = vunpack.c.h.b16 %v272
        %v443 = vunpack.c.l.b16 %v273
        %v444 = vunpack.c.h.b16 %v273
        %v445 = vunpack.c.l.b16 %v274
        %v446 = vunpack.c.h.b16 %v274
        %v447 = vunpack.c.l.b16 %v275
        %v448 = vunpack.c.h.b16 %v275
        %v449 = vunpack.c.l.b16 %v276
        %v450 = vunpack.c.h.b16 %v276
        %v451 = vunpack.c.l.b16 %v277
        %v452 = vunpack.c.h.b16 %v277
        %v453 = vunpack.c.l.b16 %v278
        %v454 = vunpack.c.h.b16 %v278
        %v455 = vunpack.c.l.b16 %v279
        %v456 = vunpack.c.h.b16 %v279
        %v457 = vunpack.c.l.b16 %v280
        %v458 = vunpack.c.h.b16 %v280
        %v459 = vunpack.c.l.b16 %v281
        %v460 = vunpack.c.h.b16 %v281
        %v461 = vunpack.c.l.b16 %v282
        %v462 = vunpack.c.h.b16 %v282
        %v463 = vunpack.c.l.b16 %v283
        %v464 = vunpack.c.h.b16 %v283
        %v465 = vunpack.c.l.b16 %v284
        %v466 = vunpack.c.h.b16 %v284
        %v467 = vunpack.c.l.b16 %v285
        %v468 = vunpack.c.h.b16 %v285
        %v469 = vunpack.c.l.b16 %v286
        %v470 = vunpack.c.h.b16 %v286
        %v471 = vunpack.c.l.b16 %v287
        %v472 = vunpack.c.h.b16 %v287
        %v473 = vunpack.c.l.b16 %v288
        %v474 = vunpack.c.h.b16 %v288
        %v475 = vunpack.c.l.b16 %v289
        %v476 = vunpack.c.h.b16 %v289
        %v477 = vunpack.c.l.b16 %v290
        %v478 = vunpack.c.h.b16 %v290
        %v479 = vunpack.c.l.b16 %v291
        %v480 = vunpack.c.h.b16 %v291
        %v481 = vunpack.c.l.b16 %v292
        %v482 = vunpack.c.h.b16 %v292
        %v483 = vunpack.c.l.b16 %v293
        %v484 = vunpack.c.h.b16 %v293
        %v485 = vunpack.c.l.b16 %v294
        %v486 = vunpack.c.h.b16 %v294
        %v487 = vunpack.c.l.b16 %v295
        %v488 = vunpack.c.h.b16 %v295
        %v489 = vunpack.c.l.b16 %v296
        %v490 = vunpack.c.h.b16 %v296
        %v491 = vunpack.c.l.b16 %v297
        %v492 = vunpack.c.h.b16 %v297
        %v493 = vunpack.c.l.b16 %v298
        %v494 = vunpack.c.h.b16 %v298
        %v495 = vunpack.c.l.b16 %v299
        %v496 = vunpack.c.h.b16 %v299
        %v497 = vunpack.c.l.b16 %v300
        %v498 = vunpack.c.h.b16 %v300
        %v499 = vunpack.c.l.b16 %v301
        %v500 = vunpack.c.h.b16 %v301
        %v501 = vunpack.c.l.b16 %v302
        %v502 = vunpack.c.h.b16 %v302
        %v503 = vunpack.c.l.b16 %v303
        %v504 = vunpack.c.h.b16 %v303
        %v505 = vunpack.c.l.b16 %v304
        %v506 = vunpack.c.h.b16 %v304
        %v507 = vunpack.c.l.b16 %v305
        %v508 = vunpack.c.h.b16 %v305
        %v509 = vunpack.c.l.b16 %v306
        %v510 = vunpack.c.h.b16 %v306
        %v511 = vunpack.c.l.b16 %v307
        %v512 = vunpack.c.h.b16 %v307
        %v513 = vunpack.c.l.b16 %v308
        %v514 = vunpack.c.h.b16 %v308
        %v515 = vunpack.c.l.b16 %v309
        %v516 = vunpack.c.h.b16 %v309
        %v517 = vunpack.c.l.b16 %v310
        %v518 = vunpack.c.h.b16 %v310
        %v519 = vunpack.c.l.b16 %v311
        %v520 = vunpack.c.h.b16 %v311
        %v521 = vunpack.c.l.b16 %v312
        %v522 = vunpack.c.h.b16 %v312
        %v523 = vunpack.c.l.b16 %v313
        %v524 = vunpack.c.h.b16 %v313
        %v525 = vunpack.c.l.b16 %v314
        %v526 = vunpack.c.h.b16 %v314
        %v527 = vunpack.c.l.b16 %v315
        %v528 = vunpack.c.h.b16 %v315
        %v529 = vunpack.c.l.b16 %v316
        %v530 = vunpack.c.h.b16 %v316
        %v531 = vpack.c.b16 %v407, %v403
        %v532 = vpack.c.b16 %v408, %v404
        %v533 = vpack.c.b16 %v409, %v405
        %v534 = vpack.c.b16 %v410, %v406
        %v535 = vpack.c.b16 %v415, %v411
        %v536 = vpack.c.b16 %v416, %v412
        %v537 = vpack.c.b16 %v417, %v413
        %v538 = vpack.c.b16 %v418, %v414
        %v539 = vpack.c.b16 %v423, %v419
        %v540 = vpack.c.b16 %v424, %v420
        %v541 = vpack.c.b16 %v425, %v421
        %v542 = vpack.c.b16 %v426, %v422
        %v543 = vpack.c.b16 %v431, %v427
        %v544 = vpack.c.b16 %v432, %v428
        %v545 = vpack.c.b16 %v433, %v429
        %v546 = vpack.c.b16 %v434, %v430
        %v547 = vpack.c.b16 %v439, %v435
        %v548 = vpack.c.b16 %v440, %v436
        %v549 = vpack.c.b16 %v441, %v437
        %v550 = vpack.c.b16 %v442, %v438
        %v551 = vpack.c.b16 %v447, %v443
        %v552 = vpack.c.b16 %v448, %v444
        %v553 = vpack.c.b16 %v449, %v445
        %v554 = vpack.c.b16 %v450, %v446
        %v555 = vpack.c.b16 %v455, %v451
        %v556 = vpack.c.b16 %v456, %v452
        %v557 = vpack.c.b16 %v457, %v453
        %v558 = vpack.c.b16 %v458, %v454
        %v559 = vpack.c.b16 %v463, %v459
        %v560 = vpack.c.b16 %v464, %v460
        %v561 = vpack.c.b16 %v465, %v461
        %v562 = vpack.c.b16 %v466, %v462
        %v563 = vpack.c.b16 %v471, %v467
        %v564 = vpack.c.b16 %v472, %v468
        %v565 = vpack.c.b16 %v473, %v469
        %v566 = vpack.c.b16 %v474, %v470
        %v567 = vpack.c.b16 %v479, %v475
        %v568 = vpack.c.b16 %v480, %v476
        %v569 = vpack.c.b16 %v481, %v477
        %v570 = vpack.c.b16 %v482, %v478
        %v571 = vpack.c.b16 %v487, %v483
        %v572 = vpack.c.b16 %v488, %v484
        %v573 = vpack.c.b16 %v489, %v485
        %v574 = vpack.c.b16 %v490, %v486
        %v575 = vpack.c.b16 %v495, %v491
        %v576 = vpack.c.b16 %v496, %v492
        %v577 = vpack.c.b16 %v497, %v493
        %v578 = vpack.c.b16 %v498, %v494
        %v579 = vpack.c.b16 %v503, %v499
        %v580 = vpack.c.b16 %v504, %v500
        %v581 = vpack.c.b16 %v505, %v501
        %v582 = vpack.c.b16 %v506, %v502
        %v583 = vpack.c.b16 %v511, %v507
        %v584 = vpack.c.b16 %v512, %v508
        %v585 = vpack.c.b16 %v513, %v509
        %v586 = vpack.c.b16 %v514, %v510
        %v587 = vpack.c.b16 %v519, %v515
        %v588 = vpack.c.b16 %v520, %v516
        %v589 = vpack.c.b16 %v521, %v517
        %v590 = vpack.c.b16 %v522, %v518
        %v591 = vpack.c.b16 %v527, %v523
        %v592 = vpack.c.b16 %v528, %v524
        %v593 = vpack.c.b16 %v529, %v525
        %v594 = vpack.c.b16 %v530, %v526
        %659 = vmatprep.subr.bf16.mxu0 %v532
        %660 = vmatpush1.bf16.msra.mxu0 %v531
        %661 = vmatprep.subr.bf16.mxu0 %v536
        %662 = vmatpush1.bf16.msra.mxu0 %v535
        %663 = vmatprep.subr.bf16.mxu0 %v540
        %664 = vmatpush1.bf16.msra.mxu0 %v539
        %665 = vmatprep.subr.bf16.mxu0 %v544
        %666 = vmatpush1.bf16.msra.mxu0 %v543
        %667 = vmatprep.subr.bf16.mxu0 %v548
        %668 = vmatpush1.bf16.msra.mxu0 %v547
        %669 = vmatprep.subr.bf16.mxu0 %v552
        %670 = vmatpush1.bf16.msra.mxu0 %v551
        %671 = vmatprep.subr.bf16.mxu0 %v556
        %672 = vmatpush1.bf16.msra.mxu0 %v555
        %673 = vmatprep.subr.bf16.mxu0 %v560
        %674 = vmatpush1.bf16.msra.mxu0 %v559
        %675 = vmatprep.subr.bf16.mxu0 %v564
        %676 = vmatpush1.bf16.msra.mxu0 %v563
        %677 = vmatprep.subr.bf16.mxu0 %v568
        %678 = vmatpush1.bf16.msra.mxu0 %v567
        %679 = vmatprep.subr.bf16.mxu0 %v572
        %680 = vmatpush1.bf16.msra.mxu0 %v571
        %681 = vmatprep.subr.bf16.mxu0 %v576
        %682 = vmatpush1.bf16.msra.mxu0 %v575
        %683 = vmatprep.subr.bf16.mxu0 %v580
        %684 = vmatpush1.bf16.msra.mxu0 %v579
        %685 = vmatprep.subr.bf16.mxu0 %v584
        %686 = vmatpush1.bf16.msra.mxu0 %v583
        %687 = vmatprep.subr.bf16.mxu0 %v588
        %688 = vmatpush1.bf16.msra.mxu0 %v587
        %689 = vmatprep.subr.bf16.mxu0 %v592
        %690 = vmatpush1.bf16.msra.mxu0 %v591
        %691 = vmatprep.mubr.bf16.mxu0 %v252
        %692 = vmatmul.mubr.bf16.gmra.mrb[0].mxu0 %v251
        %v693 = vpop.f32.mrb[0].mxu0
        %v694 = vadd.f32 %v322, %v693
        %v695 = vpop.f32.mrb[0].mxu0
        %v696 = vadd.f32 %v326, %v695
        %v697 = vpop.f32.mrb[0].mxu0
        %v698 = vadd.f32 %v322, %v697
        %v699 = vpop.f32.mrb[0].mxu0
        %v700 = vadd.f32 %v326, %v699
        %701 = vdwg.mxu0
        %702 = vmatprep.subr.bf16.mxu0 %v534
        %703 = vmatpush1.bf16.msra.mxu0 %v533
        %704 = vmatprep.subr.bf16.mxu0 %v538
        %705 = vmatpush1.bf16.msra.mxu0 %v537
        %706 = vmatprep.subr.bf16.mxu0 %v542
        %707 = vmatpush1.bf16.msra.mxu0 %v541
        %708 = vmatprep.subr.bf16.mxu0 %v546
        %709 = vmatpush1.bf16.msra.mxu0 %v545
        %710 = vmatprep.subr.bf16.mxu0 %v550
        %711 = vmatpush1.bf16.msra.mxu0 %v549
        %712 = vmatprep.subr.bf16.mxu0 %v554
        %713 = vmatpush1.bf16.msra.mxu0 %v553
        %714 = vmatprep.subr.bf16.mxu0 %v558
        %715 = vmatpush1.bf16.msra.mxu0 %v557
        %716 = vmatprep.subr.bf16.mxu0 %v562
        %717 = vmatpush1.bf16.msra.mxu0 %v561
        %718 = vmatprep.subr.bf16.mxu0 %v566
        %719 = vmatpush1.bf16.msra.mxu0 %v565
        %720 = vmatprep.subr.bf16.mxu0 %v570
        %721 = vmatpush1.bf16.msra.mxu0 %v569
        %722 = vmatprep.subr.bf16.mxu0 %v574
        %723 = vmatpush1.bf16.msra.mxu0 %v573
        %724 = vmatprep.subr.bf16.mxu0 %v578
        %725 = vmatpush1.bf16.msra.mxu0 %v577
        %726 = vmatprep.subr.bf16.mxu0 %v582
        %727 = vmatpush1.bf16.msra.mxu0 %v581
        %728 = vmatprep.subr.bf16.mxu0 %v586
        %729 = vmatpush1.bf16.msra.mxu0 %v585
        %730 = vmatprep.subr.bf16.mxu0 %v590
        %731 = vmatpush1.bf16.msra.mxu0 %v589
        %732 = vmatprep.subr.bf16.mxu0 %v594
        %733 = vmatpush1.bf16.msra.mxu0 %v593
        %734 = vmatprep.mubr.bf16.mxu0 %v252
        %735 = vmatmul.mubr.bf16.gmra.mrb[0].mxu0 %v251
        %v736 = vpop.f32.mrb[0].mxu0
        %v737 = vadd.f32 %v330, %v736
        %v738 = vpop.f32.mrb[0].mxu0
        %v739 = vadd.f32 %v334, %v738
        %v740 = vpop.f32.mrb[0].mxu0
        %v741 = vadd.f32 %v330, %v740
        %v742 = vpop.f32.mrb[0].mxu0
        %v743 = vadd.f32 %v334, %v742
        %744 = vdwg.mxu0
        %v745 = vpack.c.bf16 %v698, %v694
        %v746 = vpack.c.bf16 %v700, %v696
        %v747 = vpack.c.bf16 %v741, %v737
        %v748 = vpack.c.bf16 %v743, %v739
        %v749 = vld [vmem:[%s3] sm:$0xf]
        %v750 = vld [vmem:[%s3 + $0x4] sm:$0xf]
        %v751 = vld [vmem:[%s3 + $0x8] sm:$0xf]
        %v752 = vld [vmem:[%s3 + $0xc] sm:$0xf]
        %v753 = vld [vmem:[%s3 + $0x10] sm:$0xf]
        %v754 = vld [vmem:[%s3 + $0x14] sm:$0xf]
        %v755 = vld [vmem:[%s3 + $0x18] sm:$0xf]
        %v756 = vld [vmem:[%s3 + $0x1c] sm:$0xf]
        %v757 = vld [vmem:[%s3 + $0x20] sm:$0xf]
        %v758 = vld [vmem:[%s3 + $0x24] sm:$0xf]
        %v759 = vld [vmem:[%s3 + $0x28] sm:$0xf]
        %v760 = vld [vmem:[%s3 + $0x2c] sm:$0xf]
        %v761 = vld [vmem:[%s3 + $0x30] sm:$0xf]
        %v762 = vld [vmem:[%s3 + $0x34] sm:$0xf]
        %v763 = vld [vmem:[%s3 + $0x38] sm:$0xf]
        %v764 = vld [vmem:[%s3 + $0x3c] sm:$0xf]
        %v765 = vld [vmem:[%s3 + $0x40] sm:$0xf]
        %v766 = vld [vmem:[%s3 + $0x44] sm:$0xf]
        %v767 = vld [vmem:[%s3 + $0x48] sm:$0xf]
        %v768 = vld [vmem:[%s3 + $0x4c] sm:$0xf]
        %v769 = vld [vmem:[%s3 + $0x50] sm:$0xf]
        %v770 = vld [vmem:[%s3 + $0x54] sm:$0xf]
        %v771 = vld [vmem:[%s3 + $0x58] sm:$0xf]
        %v772 = vld [vmem:[%s3 + $0x5c] sm:$0xf]
        %v773 = vld [vmem:[%s3 + $0x60] sm:$0xf]
        %v774 = vld [vmem:[%s3 + $0x64] sm:$0xf]
        %v775 = vld [vmem:[%s3 + $0x68] sm:$0xf]
        %v776 = vld [vmem:[%s3 + $0x6c] sm:$0xf]
        %v777 = vld [vmem:[%s3 + $0x70] sm:$0xf]
        %v778 = vld [vmem:[%s3 + $0x74] sm:$0xf]
        %v779 = vld [vmem:[%s3 + $0x78] sm:$0xf]
        %v780 = vld [vmem:[%s3 + $0x7c] sm:$0xf]
        %v781 = vld [vmem:[%s3 + $0x80] sm:$0xf]
        %v782 = vld [vmem:[%s3 + $0x84] sm:$0xf]
        %v783 = vld [vmem:[%s3 + $0x88] sm:$0xf]
        %v784 = vld [vmem:[%s3 + $0x8c] sm:$0xf]
        %v785 = vld [vmem:[%s3 + $0x90] sm:$0xf]
        %v786 = vld [vmem:[%s3 + $0x94] sm:$0xf]
        %v787 = vld [vmem:[%s3 + $0x98] sm:$0xf]
        %v788 = vld [vmem:[%s3 + $0x9c] sm:$0xf]
        %v789 = vld [vmem:[%s3 + $0xa0] sm:$0xf]
        %v790 = vld [vmem:[%s3 + $0xa4] sm:$0xf]
        %v791 = vld [vmem:[%s3 + $0xa8] sm:$0xf]
        %v792 = vld [vmem:[%s3 + $0xac] sm:$0xf]
        %v793 = vld [vmem:[%s3 + $0xb0] sm:$0xf]
        %v794 = vld [vmem:[%s3 + $0xb4] sm:$0xf]
        %v795 = vld [vmem:[%s3 + $0xb8] sm:$0xf]
        %v796 = vld [vmem:[%s3 + $0xbc] sm:$0xf]
        %v797 = vld [vmem:[%s3 + $0xc0] sm:$0xf]
        %v798 = vld [vmem:[%s3 + $0xc4] sm:$0xf]
        %v799 = vld [vmem:[%s3 + $0xc8] sm:$0xf]
        %v800 = vld [vmem:[%s3 + $0xcc] sm:$0xf]
        %v801 = vld [vmem:[%s3 + $0xd0] sm:$0xf]
        %v802 = vld [vmem:[%s3 + $0xd4] sm:$0xf]
        %v803 = vld [vmem:[%s3 + $0xd8] sm:$0xf]
        %v804 = vld [vmem:[%s3 + $0xdc] sm:$0xf]
        %v805 = vld [vmem:[%s3 + $0xe0] sm:$0xf]
        %v806 = vld [vmem:[%s3 + $0xe4] sm:$0xf]
        %v807 = vld [vmem:[%s3 + $0xe8] sm:$0xf]
        %v808 = vld [vmem:[%s3 + $0xec] sm:$0xf]
        %v809 = vld [vmem:[%s3 + $0xf0] sm:$0xf]
        %v810 = vld [vmem:[%s3 + $0xf4] sm:$0xf]
        %v811 = vld [vmem:[%s3 + $0xf8] sm:$0xf]
        %v812 = vld [vmem:[%s3 + $0xfc] sm:$0xf]
        %v813 = vld [vmem:[%s4] sm:$0x1]
        %v815 = vlaneseq
        %v816 = vshrl.u32 %v815, 7
        %v817 = vsub.s32 0, %v816
        %v818 = vrot.slane %v813, %v817
        %v884 = vunpack.c.l.b16 %v749
        %v885 = vunpack.c.l.b16 %v750
        %v886 = vunpack.c.l.b16 %v751
        %v887 = vunpack.c.l.b16 %v752
        %v888 = vunpack.c.l.b16 %v753
        %v889 = vunpack.c.l.b16 %v754
        %v890 = vunpack.c.l.b16 %v755
        %v891 = vunpack.c.l.b16 %v756
        %v892 = vunpack.c.l.b16 %v757
        %v893 = vunpack.c.l.b16 %v758
        %v894 = vunpack.c.l.b16 %v759
        %v895 = vunpack.c.l.b16 %v760
        %v896 = vunpack.c.l.b16 %v761
        %v897 = vunpack.c.l.b16 %v762
        %v898 = vunpack.c.l.b16 %v763
        %v899 = vunpack.c.l.b16 %v764
        %v900 = vunpack.c.l.b16 %v765
        %v901 = vunpack.c.l.b16 %v766
        %v902 = vunpack.c.l.b16 %v767
        %v903 = vunpack.c.l.b16 %v768
        %v904 = vunpack.c.l.b16 %v769
        %v905 = vunpack.c.l.b16 %v770
        %v906 = vunpack.c.l.b16 %v771
        %v907 = vunpack.c.l.b16 %v772
        %v908 = vunpack.c.l.b16 %v773
        %v909 = vunpack.c.l.b16 %v774
        %v910 = vunpack.c.l.b16 %v775
        %v911 = vunpack.c.l.b16 %v776
        %v912 = vunpack.c.l.b16 %v777
        %v913 = vunpack.c.l.b16 %v778
        %v914 = vunpack.c.l.b16 %v779
        %v915 = vunpack.c.l.b16 %v780
        %v916 = vunpack.c.l.b16 %v781
        %v917 = vunpack.c.l.b16 %v782
        %v918 = vunpack.c.l.b16 %v783
        %v919 = vunpack.c.l.b16 %v784
        %v920 = vunpack.c.l.b16 %v785
        %v921 = vunpack.c.l.b16 %v786
        %v922 = vunpack.c.l.b16 %v787
        %v923 = vunpack.c.l.b16 %v788
        %v924 = vunpack.c.l.b16 %v789
        %v925 = vunpack.c.l.b16 %v790
        %v926 = vunpack.c.l.b16 %v791
        %v927 = vunpack.c.l.b16 %v792
        %v928 = vunpack.c.l.b16 %v793
        %v929 = vunpack.c.l.b16 %v794
        %v930 = vunpack.c.l.b16 %v795
        %v931 = vunpack.c.l.b16 %v796
        %v932 = vunpack.c.l.b16 %v797
        %v933 = vunpack.c.l.b16 %v798
        %v934 = vunpack.c.l.b16 %v799
        %v935 = vunpack.c.l.b16 %v800
        %v936 = vunpack.c.l.b16 %v801
        %v937 = vunpack.c.l.b16 %v802
        %v938 = vunpack.c.l.b16 %v803
        %v939 = vunpack.c.l.b16 %v804
        %v940 = vunpack.c.l.b16 %v805
        %v941 = vunpack.c.l.b16 %v806
        %v942 = vunpack.c.l.b16 %v807
        %v943 = vunpack.c.l.b16 %v808
        %v944 = vunpack.c.l.b16 %v809
        %v945 = vunpack.c.l.b16 %v810
        %v946 = vunpack.c.l.b16 %v811
        %v947 = vunpack.c.l.b16 %v812
        %v948 = vpack.c.b16 %v885, %v884
        %v949 = vpack.c.b16 %v887, %v886
        %v950 = vpack.c.b16 %v889, %v888
        %v951 = vpack.c.b16 %v891, %v890
        %v952 = vpack.c.b16 %v893, %v892
        %v953 = vpack.c.b16 %v895, %v894
        %v954 = vpack.c.b16 %v897, %v896
        %v955 = vpack.c.b16 %v899, %v898
        %v956 = vpack.c.b16 %v901, %v900
        %v957 = vpack.c.b16 %v903, %v902
        %v958 = vpack.c.b16 %v905, %v904
        %v959 = vpack.c.b16 %v907, %v906
        %v960 = vpack.c.b16 %v909, %v908
        %v961 = vpack.c.b16 %v911, %v910
        %v962 = vpack.c.b16 %v913, %v912
        %v963 = vpack.c.b16 %v915, %v914
        %v964 = vpack.c.b16 %v917, %v916
        %v965 = vpack.c.b16 %v919, %v918
        %v966 = vpack.c.b16 %v921, %v920
        %v967 = vpack.c.b16 %v923, %v922
        %v968 = vpack.c.b16 %v925, %v924
        %v969 = vpack.c.b16 %v927, %v926
        %v970 = vpack.c.b16 %v929, %v928
        %v971 = vpack.c.b16 %v931, %v930
        %v972 = vpack.c.b16 %v933, %v932
        %v973 = vpack.c.b16 %v935, %v934
        %v974 = vpack.c.b16 %v937, %v936
        %v975 = vpack.c.b16 %v939, %v938
        %v976 = vpack.c.b16 %v941, %v940
        %v977 = vpack.c.b16 %v943, %v942
        %v978 = vpack.c.b16 %v945, %v944
        %v979 = vpack.c.b16 %v947, %v946
        %1012 = vmatprep.subr.bf16.mxu0 0
        %1013 = vmatpush1.bf16.msra.mxu0 %v948
        %1014 = vmatprep.subr.bf16.mxu0 0
        %1015 = vmatpush1.bf16.msra.mxu0 %v949
        %1016 = vmatprep.subr.bf16.mxu0 0
        %1017 = vmatpush1.bf16.msra.mxu0 %v950
        %1018 = vmatprep.subr.bf16.mxu0 0
        %1019 = vmatpush1.bf16.msra.mxu0 %v951
        %1020 = vmatprep.subr.bf16.mxu0 0
        %1021 = vmatpush1.bf16.msra.mxu0 %v952
        %1022 = vmatprep.subr.bf16.mxu0 0
        %1023 = vmatpush1.bf16.msra.mxu0 %v953
        %1024 = vmatprep.subr.bf16.mxu0 0
        %1025 = vmatpush1.bf16.msra.mxu0 %v954
        %1026 = vmatprep.subr.bf16.mxu0 0
        %1027 = vmatpush1.bf16.msra.mxu0 %v955
        %1028 = vmatprep.subr.bf16.mxu0 0
        %1029 = vmatpush1.bf16.msra.mxu0 %v956
        %1030 = vmatprep.subr.bf16.mxu0 0
        %1031 = vmatpush1.bf16.msra.mxu0 %v957
        %1032 = vmatprep.subr.bf16.mxu0 0
        %1033 = vmatpush1.bf16.msra.mxu0 %v958
        %1034 = vmatprep.subr.bf16.mxu0 0
        %1035 = vmatpush1.bf16.msra.mxu0 %v959
        %1036 = vmatprep.subr.bf16.mxu0 0
        %1037 = vmatpush1.bf16.msra.mxu0 %v960
        %1038 = vmatprep.subr.bf16.mxu0 0
        %1039 = vmatpush1.bf16.msra.mxu0 %v961
        %1040 = vmatprep.subr.bf16.mxu0 0
        %1041 = vmatpush1.bf16.msra.mxu0 %v962
        %1042 = vmatprep.subr.bf16.mxu0 0
        %1043 = vmatpush1.bf16.msra.mxu0 %v963
        %1044 = vmatprep.mubr.bf16.mxu0 %v746
        %1045 = vmatmul.mubr.bf16.gmra.mrb[0].mxu0 %v745
        %v1046 = vpop.f32.mrb[0].mxu0
        %v1047 = vadd.f32 %v818, %v1046
        %v1048 = vpop.f32.mrb[0].mxu0
        %v1049 = vpop.f32.mrb[0].mxu0
        %v1050 = vadd.f32 %v818, %v1049
        %v1051 = vpop.f32.mrb[0].mxu0
        %1052 = vdwg.mxu0
        %1053 = vmatprep.subr.bf16.mxu0 0
        %1054 = vmatpush1.bf16.msra.mxu0 %v964
        %1055 = vmatprep.subr.bf16.mxu0 0
        %1056 = vmatpush1.bf16.msra.mxu0 %v965
        %1057 = vmatprep.subr.bf16.mxu0 0
        %1058 = vmatpush1.bf16.msra.mxu0 %v966
        %1059 = vmatprep.subr.bf16.mxu0 0
        %1060 = vmatpush1.bf16.msra.mxu0 %v967
        %1061 = vmatprep.subr.bf16.mxu0 0
        %1062 = vmatpush1.bf16.msra.mxu0 %v968
        %1063 = vmatprep.subr.bf16.mxu0 0
        %1064 = vmatpush1.bf16.msra.mxu0 %v969
        %1065 = vmatprep.subr.bf16.mxu0 0
        %1066 = vmatpush1.bf16.msra.mxu0 %v970
        %1067 = vmatprep.subr.bf16.mxu0 0
        %1068 = vmatpush1.bf16.msra.mxu0 %v971
        %1069 = vmatprep.subr.bf16.mxu0 0
        %1070 = vmatpush1.bf16.msra.mxu0 %v972
        %1071 = vmatprep.subr.bf16.mxu0 0
        %1072 = vmatpush1.bf16.msra.mxu0 %v973
        %1073 = vmatprep.subr.bf16.mxu0 0
        %1074 = vmatpush1.bf16.msra.mxu0 %v974
        %1075 = vmatprep.subr.bf16.mxu0 0
        %1076 = vmatpush1.bf16.msra.mxu0 %v975
        %1077 = vmatprep.subr.bf16.mxu0 0
        %1078 = vmatpush1.bf16.msra.mxu0 %v976
        %1079 = vmatprep.subr.bf16.mxu0 0
        %1080 = vmatpush1.bf16.msra.mxu0 %v977
        %1081 = vmatprep.subr.bf16.mxu0 0
        %1082 = vmatpush1.bf16.msra.mxu0 %v978
        %1083 = vmatprep.subr.bf16.mxu0 0
        %1084 = vmatpush1.bf16.msra.mxu0 %v979
        %1085 = vmatprep.mubr.bf16.mxu0 %v748
        %1086 = vmatmul.mubr.bf16.gmra.mrb[0].mxu0 %v747
        %v1087 = vpop.f32.mrb[0].mxu0
        %v1088 = vadd.f32 %v1047, %v1087
        %v1089 = vpop.f32.mrb[0].mxu0
        %v1090 = vpop.f32.mrb[0].mxu0
        %v1091 = vadd.f32 %v1050, %v1090
        %v1092 = vpop.f32.mrb[0].mxu0
        %1093 = vdwg.mxu0
        %1094 = vmax.xlane.f32.xlu0 %v1088
        %v1095 = vpop.xlane.xlu0 %1094
        %1096 = vmax.xlane.f32.xlu0 %v1091
        %v1097 = vpop.xlane.xlu0 %1096
        %v1098 = vsub.f32 %v1088, %v1095
        %v1099 = vsub.f32 %v1091, %v1097
        %v1100 = vmul.f32 %v1098, 1.442695
        %v1101 = vpow.pop %v1100
        %v1102 = vmul.f32 %v1099, 1.442695
        %v1103 = vpow.pop %v1102
        %1104 = vadd.xlane.f32.xlu0 %v1101
        %v1105 = vpop.xlane.xlu0 %1104
        %1106 = vadd.xlane.f32.xlu0 %v1103
        %v1107 = vpop.xlane.xlu0 %1106
        %v1108 = vlog2.pop %v1105
        %v1109 = vmul.f32 %v1108, 0.6931472
        %v1110 = vlog2.pop %v1107
        %v1111 = vmul.f32 %v1110, 0.6931472
        %v1112 = vsub.f32 %v1098, %v1109
        %v1113 = vsub.f32 %v1099, %v1111
        %1114 = vst [vmem:[%s244] sm:$0xff] %v1112
        %1115 = vst [vmem:[%s244 + $0x8] sm:$0xff] %v1113
        %s1116 = smul.u32 2, %s17
        %p1117 = scmp.lt.s32.totalorder %s1116, 3
        %s1118 = scalar_select %p1117, %s1116, 3
        %s1119 = smul.addr %s1118, 8
        %s1120 = scalar_lea.vmem %s5, %s1119
        // Predicated region
        $region45: #{net_mlp_apply.1} parent=39 // pred_check
          %p1121 = pneg %p145
        $region46: #{net_mlp_apply.1} parent=39 // pred_check_branch
          %1123 = sbr.rel (%p1121) target = $region48
        $region47: #{net_mlp_apply.1} parent=39 // pred_region
          %s1124 = smul.u32 2, %s17
        $region48: #{net_mlp_apply.1} parent=39 // pred_fallthru
          _
      $region40: #{net_mlp_apply.1} parent=5 // pred_fallthru
        _
      %p1125 = scmp.le.s32.totalorder 2, %s12
      // Predicated region
      $region49: #{net_mlp_apply.1} parent=5 // pred_check
        %p1126 = pneg %p1125
      $region50: #{net_mlp_apply.1} parent=5 // pred_check_branch
        %1128 = sbr.rel (%p1126) target = $region52
      $region51: #{net_mlp_apply.1} parent=5 // pred_region
        %s1129 = ssub.s32 %s12, 2
        // Predicated region
        $region53: #{net_mlp_apply.1} parent=51 // pred_check
          %p1130 = pneg %p151
        $region54: #{net_mlp_apply.1} parent=51 // pred_check_branch
          %1132 = sbr.rel (%p1130) target = $region56
        $region55: #{net_mlp_apply.1} parent=51 // pred_region
          %s1133 = smul.u32 2, %s18
          %p1134 = scmp.lt.s32.totalorder %s1133, 3
          %s1135 = scalar_select %p1134, %s1133, 3
          %s1136 = smul.addr %s1135, 8
          %s1137 = scalar_lea.vmem %s5, %s1136
        $region56: #{net_mlp_apply.1} parent=51 // pred_fallthru
          _
      $region52: #{net_mlp_apply.1} parent=5 // pred_fallthru
        _
    $region6: #{net_mlp_apply.1} parent=1 // loop_footer
      %s16 = sadd.s32 1, %s12
    $region7: #{net_mlp_apply.1} parent=1 // loop_footer_branch
      %11 = sbr.rel target = $region3
    $region8: #{net_mlp_apply.1} parent=1 // loop_exit
      _
    %1138 = vsyncpa [#allocation3], 1
    %s1139 = scalar_lea.sflag [#allocation3], 1
    %1140 = vsyncpa %s1139, 1

</llo_original>
